<compile_context>
chip_gen: v7x
topology: tpu7x:2x2x1
jax: 0.10.0
libtpu: 0.0.40
codegen_flags: <defaults>
</compile_context>

<pallas_src>
import numpy as np
import jax
import jax.numpy as jnp
from jax.experimental import pallas as pl
from jax.experimental.pallas import tpu as pltpu

SQRT2_INV = np.float32(1.0 / np.sqrt(2.0))


# ----------------------------------------------------------------------------
# Kernel 1: DiffusionEmbedding MLP + diffusion_projection, folded through wm.
#   emb [B,128] -> silu(@W1+b1) -> silu(@W2+b2) -> @Wp+bp = d [B,C]
#   bias = d @ wm + (bm + bc)                              -> [B, 2C]
# ----------------------------------------------------------------------------
def diffusion_embed_kernel(emb_ref, w1_ref, b1_ref, w2_ref, b2_ref,
                           wp_ref, bp_ref, wm_ref, bmc_ref, bias_ref):
    h = jnp.dot(emb_ref[...], w1_ref[...],
                preferred_element_type=jnp.float32) + b1_ref[...]
    h = h * jax.nn.sigmoid(h)                       # SiLU
    h = jnp.dot(h, w2_ref[...],
                preferred_element_type=jnp.float32) + b2_ref[...]
    h = h * jax.nn.sigmoid(h)                       # SiLU
    d = jnp.dot(h, wp_ref[...],
                preferred_element_type=jnp.float32) + bp_ref[...]      # [B, C]
    bias = jnp.dot(d, wm_ref[...],
                   preferred_element_type=jnp.float32) + bmc_ref[...]  # [B,2C]
    bias_ref[...] = bias.astype(bias_ref.dtype)


# ----------------------------------------------------------------------------
# Kernel 2: fused MergeBlock hot path over a spatial tile (channels-first).
#   x, cond tiles: [1, C, tile_s]   (C on sublanes, spatial on lanes)
#   bias        : [1, 2C, 1]        (per-batch: d@wm + bm + bc)
#   wm_t        : [2C, C] = wm^T,  wc_t: [2C, C] = wc^T
#   wr_t        : [C,  C] = wr^T,  br_t: [C, 1]
# ----------------------------------------------------------------------------
def merge_kernel(x_ref, cond_ref, bias_ref, wm_ref, wc_ref, wr_ref, br_ref,
                 o_ref):
    x = x_ref[0]                                    # [C, tile_s]
    cond = cond_ref[0]                              # [C, tile_s]
    bias = bias_ref[0]                              # [2C, 1] -> lane broadcast
    C = x.shape[0]

    # Projections (no concat copy): wm^T @ x + wc^T @ cond + per-batch bias.
    z = (jnp.dot(wm_ref[...], x, preferred_element_type=jnp.float32)
         + jnp.dot(wc_ref[...], cond, preferred_element_type=jnp.float32)
         + bias)                                    # [2C, tile_s]

    # gate / filter split on the sublane axis (8-aligned offset -> free).
    g = jax.nn.sigmoid(z[:C, :]) * jnp.tanh(z[C:, :])        # [C, tile_s]

    res = jnp.dot(wr_ref[...], g,
                  preferred_element_type=jnp.float32) + br_ref[...]

    o_ref[0] = ((x + res) * SQRT2_INV).astype(o_ref.dtype)


# ----------------------------------------------------------------------------
# Glue / wrapper
# ----------------------------------------------------------------------------
def build_embedding_table(num_steps, half_dim=64):
    # DiffWave / CSDI sinusoidal table: [num_steps, 128]
    steps = jnp.arange(num_steps, dtype=jnp.float32)[:, None]
    dims = jnp.arange(half_dim, dtype=jnp.float32)[None, :]
    table = steps * 10.0 ** (dims * 4.0 / 63.0)
    return jnp.concatenate([jnp.sin(table), jnp.cos(table)], axis=1)


def init_params(num_channel, num_steps, key):
    ks = jax.random.split(key, 12)
    C = num_channel

    def w(k, shape, scale=0.05):
        return jax.random.normal(k, shape, jnp.float32) * scale

    return {
        "embed_table": build_embedding_table(num_steps),          # [T, 128]
        # DiffusionEmbedding projections (Linear weights stored as [in, out])
        "w1": w(ks[0], (128, 512)), "b1": w(ks[1], (1, 512), 0.01),
        "w2": w(ks[2], (512, 512)), "b2": w(ks[3], (1, 512), 0.01),
        # diffusion_projection: Linear(512, C)
        "wp": w(ks[4], (512, C)), "bp": w(ks[5], (1, C), 0.01),
        # merge_diffusion: Conv2d(C, 2C, 1) -> weight stored as [C_in, 2C_out]
        "wm": w(ks[6], (C, 2 * C)), "bm": w(ks[7], (1, 2 * C), 0.01),
        # conditioner_projection: Conv2d(C, 2C, 1)
        "wc": w(ks[8], (C, 2 * C)), "bc": w(ks[9], (1, 2 * C), 0.01),
        # output_residual: Conv2d(C, C, 1)
        "wr": w(ks[10], (C, C)), "br": w(ks[11], (1, C), 0.01),
    }


def _pick_tile_s(S, max_tile=8192):
    """Largest lane-aligned spatial tile that divides S (whole row if small)."""
    if S <= max_tile:
        return S                      # block == full dim: always legal
    if S % 128 != 0:
        return S                      # fall back to whole row (stays legal)
    t = (max_tile // 128) * 128
    while t >= 128:
        if S % t == 0:
            return t
        t -= 128
    return S


def merge_block_forward(x_nchw, cond_nchw, diffusion_step, params,
                        max_tile=8192):
    B, C, H, W = x_nchw.shape
    S = H * W

    # Free reshapes: NCHW is already channels-first contiguous.
    x = x_nchw.reshape(B, C, S)
    cond = cond_nchw.reshape(B, C, S)

    # --- diffusion embedding: table gather (glue) + MLP kernel -> per-batch
    #     bias = d @ wm + bm + bc  (folds the per-pixel "+d" into the bias) ---
    emb = jnp.take(params["embed_table"], diffusion_step, axis=0)   # [B, 128]
    bmc = params["bm"] + params["bc"]                                # [1, 2C]
    bias = pl.pallas_call(
        diffusion_embed_kernel,
        out_shape=jax.ShapeDtypeStruct((B, 2 * C), jnp.float32),
    )(emb, params["w1"], params["b1"], params["w2"], params["b2"],
      params["wp"], params["bp"], params["wm"], bmc)
    bias = bias.reshape(B, 2 * C, 1)                                 # per-batch

    # Pre-transpose the tiny weights once (outside the hot loop).
    wm_t = params["wm"].T                                            # [2C, C]
    wc_t = params["wc"].T                                            # [2C, C]
    wr_t = params["wr"].T                                            # [C, C]
    br_t = params["br"].reshape(C, 1)                                # [C, 1]

    tile_s = _pick_tile_s(S, max_tile)
    grid = (B, S // tile_s)

    # Per-step VMEM: (x + cond + out) blocks * 2 buffers = 6 * C*tile_s*4 B
    # (< 1.6 MiB at C=8, tile_s=8192) + tiny weights -> well within limit.
    out = pl.pallas_call(
        merge_kernel,
        out_shape=jax.ShapeDtypeStruct((B, C, S), x.dtype),
        grid_spec=pltpu.PrefetchScalarGridSpec(
            num_scalar_prefetch=0,
            grid=grid,
            in_specs=[
                pl.BlockSpec((1, C, tile_s), lambda b, s: (b, 0, s)),   # x
                pl.BlockSpec((1, C, tile_s), lambda b, s: (b, 0, s)),   # cond
                pl.BlockSpec((1, 2 * C, 1), lambda b, s: (b, 0, 0)),    # bias
                pl.BlockSpec((2 * C, C), lambda b, s: (0, 0)),          # wm_t
                pl.BlockSpec((2 * C, C), lambda b, s: (0, 0)),          # wc_t
                pl.BlockSpec((C, C), lambda b, s: (0, 0)),              # wr_t
                pl.BlockSpec((C, 1), lambda b, s: (0, 0)),              # br_t
            ],
            out_specs=pl.BlockSpec((1, C, tile_s), lambda b, s: (b, 0, s)),
        ),
        compiler_params=pltpu.CompilerParams(
            dimension_semantics=("parallel", "parallel"),
            vmem_limit_bytes=32 * 1024 * 1024),
    )(x, cond, bias, wm_t, wc_t, wr_t, br_t)

    return out.reshape(B, C, H, W)                  # already NCHW


# ----------------------------------------------------------------------------
# Pure-JAX reference (mirrors the PyTorch forward exactly)
# ----------------------------------------------------------------------------
def reference_forward(x_nchw, cond_nchw, diffusion_step, params):
    B, C, H, W = x_nchw.shape
    emb = jnp.take(params["embed_table"], diffusion_step, axis=0)
    h = emb @ params["w1"] + params["b1"]
    h = h * jax.nn.sigmoid(h)
    h = h @ params["w2"] + params["b2"]
    h = h * jax.nn.sigmoid(h)
    d = h @ params["wp"] + params["bp"]                              # [B, C]

    x = jnp.transpose(x_nchw, (0, 2, 3, 1))                          # [B,H,W,C]
    cond = jnp.transpose(cond_nchw, (0, 2, 3, 1))
    y = x + d[:, None, None, :]
    merged = y @ params["wm"] + params["bm"]
    condp = cond @ params["wc"] + params["bc"]
    z = merged + condp
    gate, filt = z[..., :C], z[..., C:]
    g = jax.nn.sigmoid(gate) * jnp.tanh(filt)
    res = g @ params["wr"] + params["br"]
    out = (x + res) / np.sqrt(2.0)
    return jnp.transpose(out, (0, 3, 1, 2))


if __name__ == "__main__":
    B, C, H, W = 2, 8, 16, 16
    num_steps = 50                                   # len(noise_schedule)

    key = jax.random.PRNGKey(0)
    kx, kc, kp = jax.random.split(key, 3)
    x = jax.random.normal(kx, (B, C, H, W), jnp.float32)
    conditioner = jax.random.normal(kc, (B, C, H, W), jnp.float32)
    diffusion_step = jnp.array([3, 17], dtype=jnp.int32)

    params = init_params(C, num_steps, kp)

    out = merge_block_forward(x, conditioner, diffusion_step, params)
    out = jax.block_until_ready(out)

    ref = reference_forward(x, conditioner, diffusion_step, params)
    np.testing.assert_allclose(np.asarray(out), np.asarray(ref),
                               rtol=2e-5, atol=2e-5)
    print("KERNEL_OK")
</pallas_src>

<mosaic_0001>
module attributes {stable_mosaic.version = 11 : i64} {
  func.func @diffusion_embed_kernel(%arg0: memref<2x128xf32, #tpu.memory_space<vmem>>, %arg1: memref<128x512xf32, #tpu.memory_space<vmem>>, %arg2: memref<1x512xf32, #tpu.memory_space<vmem>>, %arg3: memref<512x512xf32, #tpu.memory_space<vmem>>, %arg4: memref<1x512xf32, #tpu.memory_space<vmem>>, %arg5: memref<512x8xf32, #tpu.memory_space<vmem>>, %arg6: memref<1x8xf32, #tpu.memory_space<vmem>>, %arg7: memref<8x16xf32, #tpu.memory_space<vmem>>, %arg8: memref<1x16xf32, #tpu.memory_space<vmem>>, %arg9: memref<2x16xf32, #tpu.memory_space<vmem>>) attributes {dimension_semantics = [], scalar_prefetch = 0 : i64, scratch_operands = 0 : i64, tpu.core_type = #tpu.core_type<tc>} {
    %c0 = arith.constant 0 : index
    %c0_0 = arith.constant 0 : index
    %0 = vector.load %arg0[%c0, %c0_0] : memref<2x128xf32, #tpu.memory_space<vmem>>, vector<2x128xf32>
    %c0_1 = arith.constant 0 : index
    %c0_2 = arith.constant 0 : index
    %1 = vector.load %arg1[%c0_1, %c0_2] : memref<128x512xf32, #tpu.memory_space<vmem>>, vector<128x512xf32>
    %cst = arith.constant dense<0.000000e+00> : vector<2x512xf32>
    %2 = tpu.matmul %0, %1, %cst {dimension_numbers = #tpu.dot_dimension_numbers<[1], [0], [0], [1], [0, 0, 1, 1], [], []>} : vector<2x128xf32>, vector<128x512xf32>, vector<2x512xf32> -> vector<2x512xf32>
    %c0_3 = arith.constant 0 : index
    %c0_4 = arith.constant 0 : index
    %3 = vector.load %arg2[%c0_3, %c0_4] : memref<1x512xf32, #tpu.memory_space<vmem>>, vector<1x512xf32>
    %4 = vector.broadcast %3 : vector<1x512xf32> to vector<2x512xf32>
    %5 = arith.addf %2, %4 : vector<2x512xf32>
    %6 = arith.negf %5 : vector<2x512xf32>
    %7 = math.exp %6 : vector<2x512xf32>
    %cst_5 = arith.constant 1.000000e+00 : f32
    %8 = vector.broadcast %cst_5 : f32 to vector<2x512xf32>
    %9 = arith.addf %8, %7 : vector<2x512xf32>
    %10 = arith.divf %8, %9 : vector<2x512xf32>
    %11 = arith.mulf %5, %10 : vector<2x512xf32>
    %c0_6 = arith.constant 0 : index
    %c0_7 = arith.constant 0 : index
    %12 = vector.load %arg3[%c0_6, %c0_7] : memref<512x512xf32, #tpu.memory_space<vmem>>, vector<512x512xf32>
    %cst_8 = arith.constant dense<0.000000e+00> : vector<2x512xf32>
    %13 = tpu.matmul %11, %12, %cst_8 {dimension_numbers = #tpu.dot_dimension_numbers<[1], [0], [0], [1], [0, 0, 1, 1], [], []>} : vector<2x512xf32>, vector<512x512xf32>, vector<2x512xf32> -> vector<2x512xf32>
    %c0_9 = arith.constant 0 : index
    %c0_10 = arith.constant 0 : index
    %14 = vector.load %arg4[%c0_9, %c0_10] : memref<1x512xf32, #tpu.memory_space<vmem>>, vector<1x512xf32>
    %15 = vector.broadcast %14 : vector<1x512xf32> to vector<2x512xf32>
    %16 = arith.addf %13, %15 : vector<2x512xf32>
    %17 = arith.negf %16 : vector<2x512xf32>
    %18 = math.exp %17 : vector<2x512xf32>
    %cst_11 = arith.constant 1.000000e+00 : f32
    %19 = vector.broadcast %cst_11 : f32 to vector<2x512xf32>
    %20 = arith.addf %19, %18 : vector<2x512xf32>
    %21 = arith.divf %19, %20 : vector<2x512xf32>
    %22 = arith.mulf %16, %21 : vector<2x512xf32>
    %c0_12 = arith.constant 0 : index
    %c0_13 = arith.constant 0 : index
    %23 = vector.load %arg5[%c0_12, %c0_13] : memref<512x8xf32, #tpu.memory_space<vmem>>, vector<512x8xf32>
    %cst_14 = arith.constant dense<0.000000e+00> : vector<2x8xf32>
    %24 = tpu.matmul %22, %23, %cst_14 {dimension_numbers = #tpu.dot_dimension_numbers<[1], [0], [0], [1], [0, 0, 1, 1], [], []>} : vector<2x512xf32>, vector<512x8xf32>, vector<2x8xf32> -> vector<2x8xf32>
    %c0_15 = arith.constant 0 : index
    %c0_16 = arith.constant 0 : index
    %25 = vector.load %arg6[%c0_15, %c0_16] : memref<1x8xf32, #tpu.memory_space<vmem>>, vector<1x8xf32>
    %26 = vector.broadcast %25 : vector<1x8xf32> to vector<2x8xf32>
    %27 = arith.addf %24, %26 : vector<2x8xf32>
    %c0_17 = arith.constant 0 : index
    %c0_18 = arith.constant 0 : index
    %28 = vector.load %arg7[%c0_17, %c0_18] : memref<8x16xf32, #tpu.memory_space<vmem>>, vector<8x16xf32>
    %cst_19 = arith.constant dense<0.000000e+00> : vector<2x16xf32>
    %29 = tpu.matmul %27, %28, %cst_19 {dimension_numbers = #tpu.dot_dimension_numbers<[1], [0], [0], [1], [0, 0, 1, 1], [], []>} : vector<2x8xf32>, vector<8x16xf32>, vector<2x16xf32> -> vector<2x16xf32>
    %c0_20 = arith.constant 0 : index
    %c0_21 = arith.constant 0 : index
    %30 = vector.load %arg8[%c0_20, %c0_21] : memref<1x16xf32, #tpu.memory_space<vmem>>, vector<1x16xf32>
    %31 = vector.broadcast %30 : vector<1x16xf32> to vector<2x16xf32>
    %32 = arith.addf %29, %31 : vector<2x16xf32>
    %c0_22 = arith.constant 0 : index
    %c0_23 = arith.constant 0 : index
    %33 = vector.load %arg9[%c0_22, %c0_23] : memref<2x16xf32, #tpu.memory_space<vmem>>, vector<2x16xf32>
    tpu.vector_store %arg9[%c0_22, %c0_23], %32 {strides = array<i32>} : memref<2x16xf32, #tpu.memory_space<vmem>>, vector<2x16xf32>,
    return
  }
}

</mosaic_0001>

<llo_original>
// kernel: tpu_custom_call.1
$region0: #{tpu_custom_call.1}
  #allocation0 [shape = 'u32[]', space=smem, size = 0x4, offset = 0x4, fixed_abs, tag = 'smem constant byte address 0x4 - core index']
  #allocation1 [shape = 'u32[144,128]{1,0:T(1,128)}', space=vmem, size = 0x12000, scoped, tag = 'internal scratch']
  %s0 = inlined_call_operand.vmem [shape: f32[2,128], index: 0, kind: input, shape index: {}]
  %s1 = inlined_call_operand.vmem [shape: f32[128,512], index: 1, kind: input, shape index: {}]
  %s2 = inlined_call_operand.vmem [shape: f32[1,512], index: 2, kind: input, shape index: {}]
  %s3 = inlined_call_operand.hbm [shape: f32[512,512], index: 3, kind: input, shape index: {}]
  %s4 = inlined_call_operand.vmem [shape: f32[1,512], index: 4, kind: input, shape index: {}]
  %s5 = inlined_call_operand.vmem [shape: f32[512,8], index: 5, kind: input, shape index: {}]
  %s6 = inlined_call_operand.vmem [shape: f32[1,8], index: 6, kind: input, shape index: {}]
  %s7 = inlined_call_operand.vmem [shape: f32[8,16], index: 7, kind: input, shape index: {}]
  %s8 = inlined_call_operand.vmem [shape: f32[1,16], index: 8, kind: input, shape index: {}]
  %s9 = inlined_call_operand.hbm [shape: f32[2,16], index: 9, kind: output, shape index: {}]
  %s10 = sld [smem:[#allocation0]]
  $region50: #{tpu_custom_call.1} parent=0
    _
  %s12 = ssub.s32 1, %s10
  %s13 = scalar_select 0, %s12, %s10
  $region1: #{tpu_custom_call.1} parent=0
    #allocation2 [shape = 'u8[1048576]{0}', space=vmem, size = 0x100000, scoped, tag = 'input window, operand 3, single buffered']
    #allocation3 [shape = 's32[1]{0}', space=sflag, size = 0x4, scoped, tag = 'scoped memory for tpu_custom_call.1']
    #allocation4 [shape = 's32[1]{0}', space=sflag, size = 0x4, scoped, tag = 'scoped memory for tpu_custom_call.1']
    #allocation5 [shape = 'u8[1024]{0}', space=vmem, size = 0x400, scoped, tag = 'output window, operand 0, single buffered']
    %14 = vsyncpa [#allocation3], 0
    %15 = vsyncpa [#allocation4], 0
    // Predicated region
    $region2: #{tpu_custom_call.1} parent=1 // pred_check
      _
    $region3: #{tpu_custom_call.1} parent=1 // pred_check_branch
      %17 = sbr.rel (0) target = $region5
    $region4: #{tpu_custom_call.1} parent=1 // pred_region
      _
    $region5: #{tpu_custom_call.1} parent=1 // pred_fallthru
      _
    // Predicated region
    $region6: #{tpu_custom_call.1} parent=1 // pred_check
      _
    $region7: #{tpu_custom_call.1} parent=1 // pred_check_branch
      %19 = sbr.rel (0) target = $region9
    $region8: #{tpu_custom_call.1} parent=1 // pred_region
      _
    $region9: #{tpu_custom_call.1} parent=1 // pred_fallthru
      _
    // Predicated region
    $region10: #{tpu_custom_call.1} parent=1 // pred_check
      _
    $region11: #{tpu_custom_call.1} parent=1 // pred_check_branch
      %21 = sbr.rel (0) target = $region13
    $region12: #{tpu_custom_call.1} parent=1 // pred_region
      _
    $region13: #{tpu_custom_call.1} parent=1 // pred_fallthru
      _
    // Predicated region
    $region14: #{tpu_custom_call.1} parent=1 // pred_check
      _
    $region15: #{tpu_custom_call.1} parent=1 // pred_check_branch
      %23 = sbr.rel (0) target = $region17
    $region16: #{tpu_custom_call.1} parent=1 // pred_region
      %s25 = ssub.s32 32768, 32768
      %26 = vsyncadd [#allocation3], %s25
      %s27 = sshll.u32 [#allocation2], 4
      %s28 = int_to_ptr.vmem [resolvable:$true] %s27
      %33 = dma.hbm_to_vmem [thread:$0]  %s3, 32768, %s28, [#allocation3], 512, 512, 32
    $region17: #{tpu_custom_call.1} parent=1 // pred_fallthru
      _
    // Predicated region
    $region18: #{tpu_custom_call.1} parent=1 // pred_check
      _
    $region19: #{tpu_custom_call.1} parent=1 // pred_check_branch
      %35 = sbr.rel (0) target = $region21
    $region20: #{tpu_custom_call.1} parent=1 // pred_region
      _
    $region21: #{tpu_custom_call.1} parent=1 // pred_fallthru
      _
    // Predicated region
    $region22: #{tpu_custom_call.1} parent=1 // pred_check
      _
    $region23: #{tpu_custom_call.1} parent=1 // pred_check_branch
      %37 = sbr.rel (0) target = $region25
    $region24: #{tpu_custom_call.1} parent=1 // pred_region
      _
    $region25: #{tpu_custom_call.1} parent=1 // pred_fallthru
      _
    // Predicated region
    $region26: #{tpu_custom_call.1} parent=1 // pred_check
      _
    $region27: #{tpu_custom_call.1} parent=1 // pred_check_branch
      %39 = sbr.rel (0) target = $region29
    $region28: #{tpu_custom_call.1} parent=1 // pred_region
      _
    $region29: #{tpu_custom_call.1} parent=1 // pred_fallthru
      _
    // Predicated region
    $region30: #{tpu_custom_call.1} parent=1 // pred_check
      _
    $region31: #{tpu_custom_call.1} parent=1 // pred_check_branch
      %41 = sbr.rel (0) target = $region33
    $region32: #{tpu_custom_call.1} parent=1 // pred_region
      _
    $region33: #{tpu_custom_call.1} parent=1 // pred_fallthru
      _
    // Predicated region
    $region34: #{tpu_custom_call.1} parent=1 // pred_check
      _
    $region35: #{tpu_custom_call.1} parent=1 // pred_check_branch
      %43 = sbr.rel (0) target = $region37
    $region36: #{tpu_custom_call.1} parent=1 // pred_region
      _
    $region37: #{tpu_custom_call.1} parent=1 // pred_fallthru
      _
    // Predicated region
    $region38: #{tpu_custom_call.1} parent=1 // pred_check
      _
    $region39: #{tpu_custom_call.1} parent=1 // pred_check_branch
      %45 = sbr.rel (0) target = $region41
    $region40: #{tpu_custom_call.1} parent=1 // pred_region
      %46 = dma.done [#allocation3], 32768
    $region41: #{tpu_custom_call.1} parent=1 // pred_fallthru
      _
    %v47 = vld [vmem:[%s0] sm:$0x3]
    %v48 = vld [vmem:[%s1] sm:$0xff]
    %v49 = vld [vmem:[%s1 + $0x8] sm:$0xff]
    %v50 = vld [vmem:[%s1 + $0x10] sm:$0xff]
    %v51 = vld [vmem:[%s1 + $0x18] sm:$0xff]
    %v52 = vld [vmem:[%s1 + $0x20] sm:$0xff]
    %v53 = vld [vmem:[%s1 + $0x28] sm:$0xff]
    %v54 = vld [vmem:[%s1 + $0x30] sm:$0xff]
    %v55 = vld [vmem:[%s1 + $0x38] sm:$0xff]
    %v56 = vld [vmem:[%s1 + $0x40] sm:$0xff]
    %v57 = vld [vmem:[%s1 + $0x48] sm:$0xff]
    %v58 = vld [vmem:[%s1 + $0x50] sm:$0xff]
    %v59 = vld [vmem:[%s1 + $0x58] sm:$0xff]
    %v60 = vld [vmem:[%s1 + $0x60] sm:$0xff]
    %v61 = vld [vmem:[%s1 + $0x68] sm:$0xff]
    %v62 = vld [vmem:[%s1 + $0x70] sm:$0xff]
    %v63 = vld [vmem:[%s1 + $0x78] sm:$0xff]
    %v64 = vld [vmem:[%s1 + $0x80] sm:$0xff]
    %v65 = vld [vmem:[%s1 + $0x88] sm:$0xff]
    %v66 = vld [vmem:[%s1 + $0x90] sm:$0xff]
    %v67 = vld [vmem:[%s1 + $0x98] sm:$0xff]
    %v68 = vld [vmem:[%s1 + $0xa0] sm:$0xff]
    %v69 = vld [vmem:[%s1 + $0xa8] sm:$0xff]
    %v70 = vld [vmem:[%s1 + $0xb0] sm:$0xff]
    %v71 = vld [vmem:[%s1 + $0xb8] sm:$0xff]
    %v72 = vld [vmem:[%s1 + $0xc0] sm:$0xff]
    %v73 = vld [vmem:[%s1 + $0xc8] sm:$0xff]
    %v74 = vld [vmem:[%s1 + $0xd0] sm:$0xff]
    %v75 = vld [vmem:[%s1 + $0xd8] sm:$0xff]
    %v76 = vld [vmem:[%s1 + $0xe0] sm:$0xff]
    %v77 = vld [vmem:[%s1 + $0xe8] sm:$0xff]
    %v78 = vld [vmem:[%s1 + $0xf0] sm:$0xff]
    %v79 = vld [vmem:[%s1 + $0xf8] sm:$0xff]
    %v80 = vld [vmem:[%s1 + $0x100] sm:$0xff]
    %v81 = vld [vmem:[%s1 + $0x108] sm:$0xff]
    %v82 = vld [vmem:[%s1 + $0x110] sm:$0xff]
    %v83 = vld [vmem:[%s1 + $0x118] sm:$0xff]
    %v84 = vld [vmem:[%s1 + $0x120] sm:$0xff]
    %v85 = vld [vmem:[%s1 + $0x128] sm:$0xff]
    %v86 = vld [vmem:[%s1 + $0x130] sm:$0xff]
    %v87 = vld [vmem:[%s1 + $0x138] sm:$0xff]
    %v88 = vld [vmem:[%s1 + $0x140] sm:$0xff]
    %v89 = vld [vmem:[%s1 + $0x148] sm:$0xff]
    %v90 = vld [vmem:[%s1 + $0x150] sm:$0xff]
    %v91 = vld [vmem:[%s1 + $0x158] sm:$0xff]
    %v92 = vld [vmem:[%s1 + $0x160] sm:$0xff]
    %v93 = vld [vmem:[%s1 + $0x168] sm:$0xff]
    %v94 = vld [vmem:[%s1 + $0x170] sm:$0xff]
    %v95 = vld [vmem:[%s1 + $0x178] sm:$0xff]
    %v96 = vld [vmem:[%s1 + $0x180] sm:$0xff]
    %v97 = vld [vmem:[%s1 + $0x188] sm:$0xff]
    %v98 = vld [vmem:[%s1 + $0x190] sm:$0xff]
    %v99 = vld [vmem:[%s1 + $0x198] sm:$0xff]
    %v100 = vld [vmem:[%s1 + $0x1a0] sm:$0xff]
    %v101 = vld [vmem:[%s1 + $0x1a8] sm:$0xff]
    %v102 = vld [vmem:[%s1 + $0x1b0] sm:$0xff]
    %v103 = vld [vmem:[%s1 + $0x1b8] sm:$0xff]
    %v104 = vld [vmem:[%s1 + $0x1c0] sm:$0xff]
    %v105 = vld [vmem:[%s1 + $0x1c8] sm:$0xff]
    %v106 = vld [vmem:[%s1 + $0x1d0] sm:$0xff]
    %v107 = vld [vmem:[%s1 + $0x1d8] sm:$0xff]
    %v108 = vld [vmem:[%s1 + $0x1e0] sm:$0xff]
    %v109 = vld [vmem:[%s1 + $0x1e8] sm:$0xff]
    %v110 = vld [vmem:[%s1 + $0x1f0] sm:$0xff]
    %v111 = vld [vmem:[%s1 + $0x1f8] sm:$0xff]
    %v112 = vld [vmem:[%s2] sm:$0xf]
    %v114 = vlaneseq
    %v115 = vshrl.u32 %v114, 7
    %v116 = vsub.s32 0, %v115
    %v117 = vrot.slane %v112, %v116
    %v118 = vlaneseq
    %v119 = vshrl.u32 %v118, 7
    %v120 = vsub.s32 1, %v119
    %v121 = vrot.slane %v112, %v120
    %v122 = vlaneseq
    %v123 = vshrl.u32 %v122, 7
    %v124 = vsub.s32 2, %v123
    %v125 = vrot.slane %v112, %v124
    %v126 = vlaneseq
    %v127 = vshrl.u32 %v126, 7
    %v128 = vsub.s32 3, %v127
    %v129 = vrot.slane %v112, %v128
    %134 = vmatprep.subr.mxu0 %v49
    %135 = vmatpush1.msra.mxu0 %v48
    %136 = vmatprep.subr.mxu0 %v53
    %137 = vmatpush1.msra.mxu0 %v52
    %138 = vmatprep.subr.mxu0 %v57
    %139 = vmatpush1.msra.mxu0 %v56
    %140 = vmatprep.subr.mxu0 %v61
    %141 = vmatpush1.msra.mxu0 %v60
    %142 = vmatprep.subr.mxu0 %v65
    %143 = vmatpush1.msra.mxu0 %v64
    %144 = vmatprep.subr.mxu0 %v69
    %145 = vmatpush1.msra.mxu0 %v68
    %146 = vmatprep.subr.mxu0 %v73
    %147 = vmatpush1.msra.mxu0 %v72
    %148 = vmatprep.subr.mxu0 %v77
    %149 = vmatpush1.msra.mxu0 %v76
    %150 = vmatprep.subr.mxu0 %v81
    %151 = vmatpush1.msra.mxu0 %v80
    %152 = vmatprep.subr.mxu0 %v85
    %153 = vmatpush1.msra.mxu0 %v84
    %154 = vmatprep.subr.mxu0 %v89
    %155 = vmatpush1.msra.mxu0 %v88
    %156 = vmatprep.subr.mxu0 %v93
    %157 = vmatpush1.msra.mxu0 %v92
    %158 = vmatprep.subr.mxu0 %v97
    %159 = vmatpush1.msra.mxu0 %v96
    %160 = vmatprep.subr.mxu0 %v101
    %161 = vmatpush1.msra.mxu0 %v100
    %162 = vmatprep.subr.mxu0 %v105
    %163 = vmatpush1.msra.mxu0 %v104
    %164 = vmatprep.subr.mxu0 %v109
    %165 = vmatpush1.msra.mxu0 %v108
    %166 = vmatprep.subr.mxu0 0.0
    %167 = vmatpush1.msra.mxu0 0.0
    %168 = vmatprep.subr.mxu0 0.0
    %169 = vmatpush1.msra.mxu0 0.0
    %170 = vmatprep.subr.mxu0 0.0
    %171 = vmatpush1.msra.mxu0 0.0
    %172 = vmatprep.subr.mxu0 0.0
    %173 = vmatpush1.msra.mxu0 0.0
    %174 = vmatprep.subr.mxu0 0.0
    %175 = vmatpush1.msra.mxu0 0.0
    %176 = vmatprep.subr.mxu0 0.0
    %177 = vmatpush1.msra.mxu0 0.0
    %178 = vmatprep.subr.mxu0 0.0
    %179 = vmatpush1.msra.mxu0 0.0
    %180 = vmatprep.subr.mxu0 0.0
    %181 = vmatpush1.msra.mxu0 0.0
    %182 = vmatprep.subr.mxu0 0.0
    %183 = vmatpush1.msra.mxu0 0.0
    %184 = vmatprep.subr.mxu0 0.0
    %185 = vmatpush1.msra.mxu0 0.0
    %186 = vmatprep.subr.mxu0 0.0
    %187 = vmatpush1.msra.mxu0 0.0
    %188 = vmatprep.subr.mxu0 0.0
    %189 = vmatpush1.msra.mxu0 0.0
    %190 = vmatprep.subr.mxu0 0.0
    %191 = vmatpush1.msra.mxu0 0.0
    %192 = vmatprep.subr.mxu0 0.0
    %193 = vmatpush1.msra.mxu0 0.0
    %194 = vmatprep.subr.mxu0 0.0
    %195 = vmatpush1.msra.mxu0 0.0
    %196 = vmatprep.subr.mxu0 0.0
    %197 = vmatpush1.msra.mxu0 0.0
    %198 = vmatprep.mubr.f32.mxu0 0.0
    %199 = vmatmul.mubr.f32.gmra.mrb[0].mxu0 %v47
    %v200 = vpop.f32.mrb[0].mxu0
    %v201 = vadd.f32 %v117, %v200
    %v202 = vpop.f32.mrb[0].mxu0
    %v203 = vadd.f32 %v121, %v202
    %204 = vdwg.mxu0
    %205 = vmatprep.subr.mxu0 %v51
    %206 = vmatpush1.msra.mxu0 %v50
    %207 = vmatprep.subr.mxu0 %v55
    %208 = vmatpush1.msra.mxu0 %v54
    %209 = vmatprep.subr.mxu0 %v59
    %210 = vmatpush1.msra.mxu0 %v58
    %211 = vmatprep.subr.mxu0 %v63
    %212 = vmatpush1.msra.mxu0 %v62
    %213 = vmatprep.subr.mxu0 %v67
    %214 = vmatpush1.msra.mxu0 %v66
    %215 = vmatprep.subr.mxu0 %v71
    %216 = vmatpush1.msra.mxu0 %v70
    %217 = vmatprep.subr.mxu0 %v75
    %218 = vmatpush1.msra.mxu0 %v74
    %219 = vmatprep.subr.mxu0 %v79
    %220 = vmatpush1.msra.mxu0 %v78
    %221 = vmatprep.subr.mxu0 %v83
    %222 = vmatpush1.msra.mxu0 %v82
    %223 = vmatprep.subr.mxu0 %v87
    %224 = vmatpush1.msra.mxu0 %v86
    %225 = vmatprep.subr.mxu0 %v91
    %226 = vmatpush1.msra.mxu0 %v90
    %227 = vmatprep.subr.mxu0 %v95
    %228 = vmatpush1.msra.mxu0 %v94
    %229 = vmatprep.subr.mxu0 %v99
    %230 = vmatpush1.msra.mxu0 %v98
    %231 = vmatprep.subr.mxu0 %v103
    %232 = vmatpush1.msra.mxu0 %v102
    %233 = vmatprep.subr.mxu0 %v107
    %234 = vmatpush1.msra.mxu0 %v106
    %235 = vmatprep.subr.mxu0 %v111
    %236 = vmatpush1.msra.mxu0 %v110
    %237 = vmatprep.subr.mxu0 0.0
    %238 = vmatpush1.msra.mxu0 0.0
    %239 = vmatprep.subr.mxu0 0.0
    %240 = vmatpush1.msra.mxu0 0.0
    %241 = vmatprep.subr.mxu0 0.0
    %242 = vmatpush1.msra.mxu0 0.0
    %243 = vmatprep.subr.mxu0 0.0
    %244 = vmatpush1.msra.mxu0 0.0
    %245 = vmatprep.subr.mxu0 0.0
    %246 = vmatpush1.msra.mxu0 0.0
    %247 = vmatprep.subr.mxu0 0.0
    %248 = vmatpush1.msra.mxu0 0.0
    %249 = vmatprep.subr.mxu0 0.0
    %250 = vmatpush1.msra.mxu0 0.0
    %251 = vmatprep.subr.mxu0 0.0
    %252 = vmatpush1.msra.mxu0 0.0
    %253 = vmatprep.subr.mxu0 0.0
    %254 = vmatpush1.msra.mxu0 0.0
    %255 = vmatprep.subr.mxu0 0.0
    %256 = vmatpush1.msra.mxu0 0.0
    %257 = vmatprep.subr.mxu0 0.0
    %258 = vmatpush1.msra.mxu0 0.0
    %259 = vmatprep.subr.mxu0 0.0
    %260 = vmatpush1.msra.mxu0 0.0
    %261 = vmatprep.subr.mxu0 0.0
    %262 = vmatpush1.msra.mxu0 0.0
    %263 = vmatprep.subr.mxu0 0.0
    %264 = vmatpush1.msra.mxu0 0.0
    %265 = vmatprep.subr.mxu0 0.0
    %266 = vmatpush1.msra.mxu0 0.0
    %267 = vmatprep.subr.mxu0 0.0
    %268 = vmatpush1.msra.mxu0 0.0
    %269 = vmatprep.mubr.f32.mxu0 0.0
    %270 = vmatmul.mubr.f32.gmra.mrb[0].mxu0 %v47
    %v271 = vpop.f32.mrb[0].mxu0
    %v272 = vadd.f32 %v125, %v271
    %v273 = vpop.f32.mrb[0].mxu0
    %v274 = vadd.f32 %v129, %v273
    %275 = vdwg.mxu0
    %v276 = vxor.u32 %v201, 2147483648
    %v277 = vxor.u32 %v203, 2147483648
    %v278 = vxor.u32 %v272, 2147483648
    %v279 = vxor.u32 %v274, 2147483648
    %v280 = vmul.f32 %v276, 1.442695
    %v281 = vpow.pop %v280
    %v282 = vmul.f32 %v277, 1.442695
    %v283 = vpow.pop %v282
    %v284 = vmul.f32 %v278, 1.442695
    %v285 = vpow.pop %v284
    %v286 = vmul.f32 %v279, 1.442695
    %v287 = vpow.pop %v286
    %v288 = vadd.f32 %v281, 1.0
    %v289 = vadd.f32 %v283, 1.0
    %v290 = vadd.f32 %v285, 1.0
    %v291 = vadd.f32 %v287, 1.0
    %v292 = vrcp.pop %v288
    %v293 = vmul.f32 1.0, %v292
    %v294 = vrcp.pop %v289
    %v295 = vmul.f32 1.0, %v294
    %v296 = vrcp.pop %v290
    %v297 = vmul.f32 1.0, %v296
    %v298 = vrcp.pop %v291
    %v299 = vmul.f32 1.0, %v298
    %v300 = vmul.f32 %v201, %v293
    %v301 = vmul.f32 %v203, %v295
    %v302 = vmul.f32 %v272, %v297
    %v303 = vmul.f32 %v274, %v299
    %v304 = vld [vmem:[#allocation2] sm:$0xff]
    %v305 = vld [vmem:[#allocation2 + $0x8] sm:$0xff]
    %v306 = vld [vmem:[#allocation2 + $0x10] sm:$0xff]
    %v307 = vld [vmem:[#allocation2 + $0x18] sm:$0xff]
    %v308 = vld [vmem:[#allocation2 + $0x20] sm:$0xff]
    %v309 = vld [vmem:[#allocation2 + $0x28] sm:$0xff]
    %v310 = vld [vmem:[#allocation2 + $0x30] sm:$0xff]
    %v311 = vld [vmem:[#allocation2 + $0x38] sm:$0xff]
    %v312 = vld [vmem:[#allocation2 + $0x40] sm:$0xff]
    %v313 = vld [vmem:[#allocation2 + $0x48] sm:$0xff]
    %v314 = vld [vmem:[#allocation2 + $0x50] sm:$0xff]
    %v315 = vld [vmem:[#allocation2 + $0x58] sm:$0xff]
    %v316 = vld [vmem:[#allocation2 + $0x60] sm:$0xff]
    %v317 = vld [vmem:[#allocation2 + $0x68] sm:$0xff]
    %v318 = vld [vmem:[#allocation2 + $0x70] sm:$0xff]
    %v319 = vld [vmem:[#allocation2 + $0x78] sm:$0xff]
    %v320 = vld [vmem:[#allocation2 + $0x80] sm:$0xff]
    %v321 = vld [vmem:[#allocation2 + $0x88] sm:$0xff]
    %v322 = vld [vmem:[#allocation2 + $0x90] sm:$0xff]
    %v323 = vld [vmem:[#allocation2 + $0x98] sm:$0xff]
    %v324 = vld [vmem:[#allocation2 + $0xa0] sm:$0xff]
    %v325 = vld [vmem:[#allocation2 + $0xa8] sm:$0xff]
    %v326 = vld [vmem:[#allocation2 + $0xb0] sm:$0xff]
    %v327 = vld [vmem:[#allocation2 + $0xb8] sm:$0xff]
    %v328 = vld [vmem:[#allocation2 + $0xc0] sm:$0xff]
    %v329 = vld [vmem:[#allocation2 + $0xc8] sm:$0xff]
    %v330 = vld [vmem:[#allocation2 + $0xd0] sm:$0xff]
    %v331 = vld [vmem:[#allocation2 + $0xd8] sm:$0xff]
    %v332 = vld [vmem:[#allocation2 + $0xe0] sm:$0xff]
    %v333 = vld [vmem:[#allocation2 + $0xe8] sm:$0xff]
    %v334 = vld [vmem:[#allocation2 + $0xf0] sm:$0xff]
    %v335 = vld [vmem:[#allocation2 + $0xf8] sm:$0xff]
    %v336 = vld [vmem:[#allocation2 + $0x100] sm:$0xff]
    %v337 = vld [vmem:[#allocation2 + $0x108] sm:$0xff]
    %v338 = vld [vmem:[#allocation2 + $0x110] sm:$0xff]
    %v339 = vld [vmem:[#allocation2 + $0x118] sm:$0xff]
    %v340 = vld [vmem:[#allocation2 + $0x120] sm:$0xff]
    %v341 = vld [vmem:[#allocation2 + $0x128] sm:$0xff]
    %v342 = vld [vmem:[#allocation2 + $0x130] sm:$0xff]
    %v343 = vld [vmem:[#allocation2 + $0x138] sm:$0xff]
    %v344 = vld [vmem:[#allocation2 + $0x140] sm:$0xff]
    %v345 = vld [vmem:[#allocation2 + $0x148] sm:$0xff]
    %v346 = vld [vmem:[#allocation2 + $0x150] sm:$0xff]
    %v347 = vld [vmem:[#allocation2 + $0x158] sm:$0xff]
    %v348 = vld [vmem:[#allocation2 + $0x160] sm:$0xff]
    %v349 = vld [vmem:[#allocation2 + $0x168] sm:$0xff]
    %v350 = vld [vmem:[#allocation2 + $0x170] sm:$0xff]
    %v351 = vld [vmem:[#allocation2 + $0x178] sm:$0xff]
    %v352 = vld [vmem:[#allocation2 + $0x180] sm:$0xff]
    %v353 = vld [vmem:[#allocation2 + $0x188] sm:$0xff]
    %v354 = vld [vmem:[#allocation2 + $0x190] sm:$0xff]
    %v355 = vld [vmem:[#allocation2 + $0x198] sm:$0xff]
    %v356 = vld [vmem:[#allocation2 + $0x1a0] sm:$0xff]
    %v357 = vld [vmem:[#allocation2 + $0x1a8] sm:$0xff]
    %v358 = vld [vmem:[#allocation2 + $0x1b0] sm:$0xff]
    %v359 = vld [vmem:[#allocation2 + $0x1b8] sm:$0xff]
    %v360 = vld [vmem:[#allocation2 + $0x1c0] sm:$0xff]
    %v361 = vld [vmem:[#allocation2 + $0x1c8] sm:$0xff]
    %v362 = vld [vmem:[#allocation2 + $0x1d0] sm:$0xff]
    %v363 = vld [vmem:[#allocation2 + $0x1d8] sm:$0xff]
    %v364 = vld [vmem:[#allocation2 + $0x1e0] sm:$0xff]
    %v365 = vld [vmem:[#allocation2 + $0x1e8] sm:$0xff]
    %v366 = vld [vmem:[#allocation2 + $0x1f0] sm:$0xff]
    %v367 = vld [vmem:[#allocation2 + $0x1f8] sm:$0xff]
    %v368 = vld [vmem:[#allocation2 + $0x200] sm:$0xff]
    %v369 = vld [vmem:[#allocation2 + $0x208] sm:$0xff]
    %v370 = vld [vmem:[#allocation2 + $0x210] sm:$0xff]
    %v371 = vld [vmem:[#allocation2 + $0x218] sm:$0xff]
    %v372 = vld [vmem:[#allocation2 + $0x220] sm:$0xff]
    %v373 = vld [vmem:[#allocation2 + $0x228] sm:$0xff]
    %v374 = vld [vmem:[#allocation2 + $0x230] sm:$0xff]
    %v375 = vld [vmem:[#allocation2 + $0x238] sm:$0xff]
    %v376 = vld [vmem:[#allocation2 + $0x240] sm:$0xff]
    %v377 = vld [vmem:[#allocation2 + $0x248] sm:$0xff]
    %v378 = vld [vmem:[#allocation2 + $0x250] sm:$0xff]
    %v379 = vld [vmem:[#allocation2 + $0x258] sm:$0xff]
    %v380 = vld [vmem:[#allocation2 + $0x260] sm:$0xff]
    %v381 = vld [vmem:[#allocation2 + $0x268] sm:$0xff]
    %v382 = vld [vmem:[#allocation2 + $0x270] sm:$0xff]
    %v383 = vld [vmem:[#allocation2 + $0x278] sm:$0xff]
    %v384 = vld [vmem:[#allocation2 + $0x280] sm:$0xff]
    %v385 = vld [vmem:[#allocation2 + $0x288] sm:$0xff]
    %v386 = vld [vmem:[#allocation2 + $0x290] sm:$0xff]
    %v387 = vld [vmem:[#allocation2 + $0x298] sm:$0xff]
    %v388 = vld [vmem:[#allocation2 + $0x2a0] sm:$0xff]
    %v389 = vld [vmem:[#allocation2 + $0x2a8] sm:$0xff]
    %v390 = vld [vmem:[#allocation2 + $0x2b0] sm:$0xff]
    %v391 = vld [vmem:[#allocation2 + $0x2b8] sm:$0xff]
    %v392 = vld [vmem:[#allocation2 + $0x2c0] sm:$0xff]
    %v393 = vld [vmem:[#allocation2 + $0x2c8] sm:$0xff]
    %v394 = vld [vmem:[#allocation2 + $0x2d0] sm:$0xff]
    %v395 = vld [vmem:[#allocation2 + $0x2d8] sm:$0xff]
    %v396 = vld [vmem:[#allocation2 + $0x2e0] sm:$0xff]
    %v397 = vld [vmem:[#allocation2 + $0x2e8] sm:$0xff]
    %v398 = vld [vmem:[#allocation2 + $0x2f0] sm:$0xff]
    %v399 = vld [vmem:[#allocation2 + $0x2f8] sm:$0xff]
    %v400 = vld [vmem:[#allocation2 + $0x300] sm:$0xff]
    %v401 = vld [vmem:[#allocation2 + $0x308] sm:$0xff]
    %v402 = vld [vmem:[#allocation2 + $0x310] sm:$0xff]
    %v403 = vld [vmem:[#allocation2 + $0x318] sm:$0xff]
    %v404 = vld [vmem:[#allocation2 + $0x320] sm:$0xff]
    %v405 = vld [vmem:[#allocation2 + $0x328] sm:$0xff]
    %v406 = vld [vmem:[#allocation2 + $0x330] sm:$0xff]
    %v407 = vld [vmem:[#allocation2 + $0x338] sm:$0xff]
    %v408 = vld [vmem:[#allocation2 + $0x340] sm:$0xff]
    %v409 = vld [vmem:[#allocation2 + $0x348] sm:$0xff]
    %v410 = vld [vmem:[#allocation2 + $0x350] sm:$0xff]
    %v411 = vld [vmem:[#allocation2 + $0x358] sm:$0xff]
    %v412 = vld [vmem:[#allocation2 + $0x360] sm:$0xff]
    %v413 = vld [vmem:[#allocation2 + $0x368] sm:$0xff]
    %v414 = vld [vmem:[#allocation2 + $0x370] sm:$0xff]
    %v415 = vld [vmem:[#allocation2 + $0x378] sm:$0xff]
    %v416 = vld [vmem:[#allocation2 + $0x380] sm:$0xff]
    %v417 = vld [vmem:[#allocation2 + $0x388] sm:$0xff]
    %v418 = vld [vmem:[#allocation2 + $0x390] sm:$0xff]
    %v419 = vld [vmem:[#allocation2 + $0x398] sm:$0xff]
    %v420 = vld [vmem:[#allocation2 + $0x3a0] sm:$0xff]
    %v421 = vld [vmem:[#allocation2 + $0x3a8] sm:$0xff]
    %v422 = vld [vmem:[#allocation2 + $0x3b0] sm:$0xff]
    %v423 = vld [vmem:[#allocation2 + $0x3b8] sm:$0xff]
    %v424 = vld [vmem:[#allocation2 + $0x3c0] sm:$0xff]
    %v425 = vld [vmem:[#allocation2 + $0x3c8] sm:$0xff]
    %v426 = vld [vmem:[#allocation2 + $0x3d0] sm:$0xff]
    %v427 = vld [vmem:[#allocation2 + $0x3d8] sm:$0xff]
    %v428 = vld [vmem:[#allocation2 + $0x3e0] sm:$0xff]
    %v429 = vld [vmem:[#allocation2 + $0x3e8] sm:$0xff]
    %v430 = vld [vmem:[#allocation2 + $0x3f0] sm:$0xff]
    %v431 = vld [vmem:[#allocation2 + $0x3f8] sm:$0xff]
    %v432 = vld [vmem:[#allocation2 + $0x400] sm:$0xff]
    %v433 = vld [vmem:[#allocation2 + $0x408] sm:$0xff]
    %v434 = vld [vmem:[#allocation2 + $0x410] sm:$0xff]
    %v435 = vld [vmem:[#allocation2 + $0x418] sm:$0xff]
    %v436 = vld [vmem:[#allocation2 + $0x420] sm:$0xff]
    %v437 = vld [vmem:[#allocation2 + $0x428] sm:$0xff]
    %v438 = vld [vmem:[#allocation2 + $0x430] sm:$0xff]
    %v439 = vld [vmem:[#allocation2 + $0x438] sm:$0xff]
    %v440 = vld [vmem:[#allocation2 + $0x440] sm:$0xff]
    %v441 = vld [vmem:[#allocation2 + $0x448] sm:$0xff]
    %v442 = vld [vmem:[#allocation2 + $0x450] sm:$0xff]
    %v443 = vld [vmem:[#allocation2 + $0x458] sm:$0xff]
    %v444 = vld [vmem:[#allocation2 + $0x460] sm:$0xff]
    %v445 = vld [vmem:[#allocation2 + $0x468] sm:$0xff]
    %v446 = vld [vmem:[#allocation2 + $0x470] sm:$0xff]
    %v447 = vld [vmem:[#allocation2 + $0x478] sm:$0xff]
    %v448 = vld [vmem:[#allocation2 + $0x480] sm:$0xff]
    %v449 = vld [vmem:[#allocation2 + $0x488] sm:$0xff]
    %v450 = vld [vmem:[#allocation2 + $0x490] sm:$0xff]
    %v451 = vld [vmem:[#allocation2 + $0x498] sm:$0xff]
    %v452 = vld [vmem:[#allocation2 + $0x4a0] sm:$0xff]
    %v453 = vld [vmem:[#allocation2 + $0x4a8] sm:$0xff]
    %v454 = vld [vmem:[#allocation2 + $0x4b0] sm:$0xff]
    %v455 = vld [vmem:[#allocation2 + $0x4b8] sm:$0xff]
    %v456 = vld [vmem:[#allocation2 + $0x4c0] sm:$0xff]
    %v457 = vld [vmem:[#allocation2 + $0x4c8] sm:$0xff]
    %v458 = vld [vmem:[#allocation2 + $0x4d0] sm:$0xff]
    %v459 = vld [vmem:[#allocation2 + $0x4d8] sm:$0xff]
    %v460 = vld [vmem:[#allocation2 + $0x4e0] sm:$0xff]
    %v461 = vld [vmem:[#allocation2 + $0x4e8] sm:$0xff]
    %v462 = vld [vmem:[#allocation2 + $0x4f0] sm:$0xff]
    %v463 = vld [vmem:[#allocation2 + $0x4f8] sm:$0xff]
    %v464 = vld [vmem:[#allocation2 + $0x500] sm:$0xff]
    %v465 = vld [vmem:[#allocation2 + $0x508] sm:$0xff]
    %v466 = vld [vmem:[#allocation2 + $0x510] sm:$0xff]
    %v467 = vld [vmem:[#allocation2 + $0x518] sm:$0xff]
    %v468 = vld [vmem:[#allocation2 + $0x520] sm:$0xff]
    %v469 = vld [vmem:[#allocation2 + $0x528] sm:$0xff]
    %v470 = vld [vmem:[#allocation2 + $0x530] sm:$0xff]
    %v471 = vld [vmem:[#allocation2 + $0x538] sm:$0xff]
    %v472 = vld [vmem:[#allocation2 + $0x540] sm:$0xff]
    %v473 = vld [vmem:[#allocation2 + $0x548] sm:$0xff]
    %v474 = vld [vmem:[#allocation2 + $0x550] sm:$0xff]
    %v475 = vld [vmem:[#allocation2 + $0x558] sm:$0xff]
    %v476 = vld [vmem:[#allocation2 + $0x560] sm:$0xff]
    %v477 = vld [vmem:[#allocation2 + $0x568] sm:$0xff]
    %v478 = vld [vmem:[#allocation2 + $0x570] sm:$0xff]
    %v479 = vld [vmem:[#allocation2 + $0x578] sm:$0xff]
    %v480 = vld [vmem:[#allocation2 + $0x580] sm:$0xff]
    %v481 = vld [vmem:[#allocation2 + $0x588] sm:$0xff]
    %v482 = vld [vmem:[#allocation2 + $0x590] sm:$0xff]
    %v483 = vld [vmem:[#allocation2 + $0x598] sm:$0xff]
    %v484 = vld [vmem:[#allocation2 + $0x5a0] sm:$0xff]
    %v485 = vld [vmem:[#allocation2 + $0x5a8] sm:$0xff]
    %v486 = vld [vmem:[#allocation2 + $0x5b0] sm:$0xff]
    %v487 = vld [vmem:[#allocation2 + $0x5b8] sm:$0xff]
    %v488 = vld [vmem:[#allocation2 + $0x5c0] sm:$0xff]
    %v489 = vld [vmem:[#allocation2 + $0x5c8] sm:$0xff]
    %v490 = vld [vmem:[#allocation2 + $0x5d0] sm:$0xff]
    %v491 = vld [vmem:[#allocation2 + $0x5d8] sm:$0xff]
    %v492 = vld [vmem:[#allocation2 + $0x5e0] sm:$0xff]
    %v493 = vld [vmem:[#allocation2 + $0x5e8] sm:$0xff]
    %v494 = vld [vmem:[#allocation2 + $0x5f0] sm:$0xff]
    %v495 = vld [vmem:[#allocation2 + $0x5f8] sm:$0xff]
    %v496 = vld [vmem:[#allocation2 + $0x600] sm:$0xff]
    %v497 = vld [vmem:[#allocation2 + $0x608] sm:$0xff]
    %v498 = vld [vmem:[#allocation2 + $0x610] sm:$0xff]
    %v499 = vld [vmem:[#allocation2 + $0x618] sm:$0xff]
    %v500 = vld [vmem:[#allocation2 + $0x620] sm:$0xff]
    %v501 = vld [vmem:[#allocation2 + $0x628] sm:$0xff]
    %v502 = vld [vmem:[#allocation2 + $0x630] sm:$0xff]
    %v503 = vld [vmem:[#allocation2 + $0x638] sm:$0xff]
    %v504 = vld [vmem:[#allocation2 + $0x640] sm:$0xff]
    %v505 = vld [vmem:[#allocation2 + $0x648] sm:$0xff]
    %v506 = vld [vmem:[#allocation2 + $0x650] sm:$0xff]
    %v507 = vld [vmem:[#allocation2 + $0x658] sm:$0xff]
    %v508 = vld [vmem:[#allocation2 + $0x660] sm:$0xff]
    %v509 = vld [vmem:[#allocation2 + $0x668] sm:$0xff]
    %v510 = vld [vmem:[#allocation2 + $0x670] sm:$0xff]
    %v511 = vld [vmem:[#allocation2 + $0x678] sm:$0xff]
    %v512 = vld [vmem:[#allocation2 + $0x680] sm:$0xff]
    %v513 = vld [vmem:[#allocation2 + $0x688] sm:$0xff]
    %v514 = vld [vmem:[#allocation2 + $0x690] sm:$0xff]
    %v515 = vld [vmem:[#allocation2 + $0x698] sm:$0xff]
    %v516 = vld [vmem:[#allocation2 + $0x6a0] sm:$0xff]
    %v517 = vld [vmem:[#allocation2 + $0x6a8] sm:$0xff]
    %v518 = vld [vmem:[#allocation2 + $0x6b0] sm:$0xff]
    %v519 = vld [vmem:[#allocation2 + $0x6b8] sm:$0xff]
    %v520 = vld [vmem:[#allocation2 + $0x6c0] sm:$0xff]
    %v521 = vld [vmem:[#allocation2 + $0x6c8] sm:$0xff]
    %v522 = vld [vmem:[#allocation2 + $0x6d0] sm:$0xff]
    %v523 = vld [vmem:[#allocation2 + $0x6d8] sm:$0xff]
    %v524 = vld [vmem:[#allocation2 + $0x6e0] sm:$0xff]
    %v525 = vld [vmem:[#allocation2 + $0x6e8] sm:$0xff]
    %v526 = vld [vmem:[#allocation2 + $0x6f0] sm:$0xff]
    %v527 = vld [vmem:[#allocation2 + $0x6f8] sm:$0xff]
    %v528 = vld [vmem:[#allocation2 + $0x700] sm:$0xff]
    %v529 = vld [vmem:[#allocation2 + $0x708] sm:$0xff]
    %v530 = vld [vmem:[#allocation2 + $0x710] sm:$0xff]
    %v531 = vld [vmem:[#allocation2 + $0x718] sm:$0xff]
    %v532 = vld [vmem:[#allocation2 + $0x720] sm:$0xff]
    %v533 = vld [vmem:[#allocation2 + $0x728] sm:$0xff]
    %v534 = vld [vmem:[#allocation2 + $0x730] sm:$0xff]
    %v535 = vld [vmem:[#allocation2 + $0x738] sm:$0xff]
    %v536 = vld [vmem:[#allocation2 + $0x740] sm:$0xff]
    %v537 = vld [vmem:[#allocation2 + $0x748] sm:$0xff]
    %v538 = vld [vmem:[#allocation2 + $0x750] sm:$0xff]
    %v539 = vld [vmem:[#allocation2 + $0x758] sm:$0xff]
    %v540 = vld [vmem:[#allocation2 + $0x760] sm:$0xff]
    %v541 = vld [vmem:[#allocation2 + $0x768] sm:$0xff]
    %v542 = vld [vmem:[#allocation2 + $0x770] sm:$0xff]
    %v543 = vld [vmem:[#allocation2 + $0x778] sm:$0xff]
    %v544 = vld [vmem:[#allocation2 + $0x780] sm:$0xff]
    %v545 = vld [vmem:[#allocation2 + $0x788] sm:$0xff]
    %v546 = vld [vmem:[#allocation2 + $0x790] sm:$0xff]
    %v547 = vld [vmem:[#allocation2 + $0x798] sm:$0xff]
    %v548 = vld [vmem:[#allocation2 + $0x7a0] sm:$0xff]
    %v549 = vld [vmem:[#allocation2 + $0x7a8] sm:$0xff]
    %v550 = vld [vmem:[#allocation2 + $0x7b0] sm:$0xff]
    %v551 = vld [vmem:[#allocation2 + $0x7b8] sm:$0xff]
    %v552 = vld [vmem:[#allocation2 + $0x7c0] sm:$0xff]
    %v553 = vld [vmem:[#allocation2 + $0x7c8] sm:$0xff]
    %v554 = vld [vmem:[#allocation2 + $0x7d0] sm:$0xff]
    %v555 = vld [vmem:[#allocation2 + $0x7d8] sm:$0xff]
    %v556 = vld [vmem:[#allocation2 + $0x7e0] sm:$0xff]
    %v557 = vld [vmem:[#allocation2 + $0x7e8] sm:$0xff]
    %v558 = vld [vmem:[#allocation2 + $0x7f0] sm:$0xff]
    %v559 = vld [vmem:[#allocation2 + $0x7f8] sm:$0xff]
    %v560 = vld [vmem:[%s4] sm:$0xf]
    %v562 = vlaneseq
    %v563 = vshrl.u32 %v562, 7
    %v564 = vsub.s32 0, %v563
    %v565 = vrot.slane %v560, %v564
    %v566 = vlaneseq
    %v567 = vshrl.u32 %v566, 7
    %v568 = vsub.s32 1, %v567
    %v569 = vrot.slane %v560, %v568
    %v570 = vlaneseq
    %v571 = vshrl.u32 %v570, 7
    %v572 = vsub.s32 2, %v571
    %v573 = vrot.slane %v560, %v572
    %v574 = vlaneseq
    %v575 = vshrl.u32 %v574, 7
    %v576 = vsub.s32 3, %v575
    %v577 = vrot.slane %v560, %v576
    %582 = vmatprep.subr.mxu0 %v305
    %583 = vmatpush1.msra.mxu0 %v304
    %584 = vmatprep.subr.mxu0 %v309
    %585 = vmatpush1.msra.mxu0 %v308
    %586 = vmatprep.subr.mxu0 %v313
    %587 = vmatpush1.msra.mxu0 %v312
    %588 = vmatprep.subr.mxu0 %v317
    %589 = vmatpush1.msra.mxu0 %v316
    %590 = vmatprep.subr.mxu0 %v321
    %591 = vmatpush1.msra.mxu0 %v320
    %592 = vmatprep.subr.mxu0 %v325
    %593 = vmatpush1.msra.mxu0 %v324
    %594 = vmatprep.subr.mxu0 %v329
    %595 = vmatpush1.msra.mxu0 %v328
    %596 = vmatprep.subr.mxu0 %v333
    %597 = vmatpush1.msra.mxu0 %v332
    %598 = vmatprep.subr.mxu0 %v337
    %599 = vmatpush1.msra.mxu0 %v336
    %600 = vmatprep.subr.mxu0 %v341
    %601 = vmatpush1.msra.mxu0 %v340
    %602 = vmatprep.subr.mxu0 %v345
    %603 = vmatpush1.msra.mxu0 %v344
    %604 = vmatprep.subr.mxu0 %v349
    %605 = vmatpush1.msra.mxu0 %v348
    %606 = vmatprep.subr.mxu0 %v353
    %607 = vmatpush1.msra.mxu0 %v352
    %608 = vmatprep.subr.mxu0 %v357
    %609 = vmatpush1.msra.mxu0 %v356
    %610 = vmatprep.subr.mxu0 %v361
    %611 = vmatpush1.msra.mxu0 %v360
    %612 = vmatprep.subr.mxu0 %v365
    %613 = vmatpush1.msra.mxu0 %v364
    %614 = vmatprep.subr.mxu0 %v369
    %615 = vmatpush1.msra.mxu0 %v368
    %616 = vmatprep.subr.mxu0 %v373
    %617 = vmatpush1.msra.mxu0 %v372
    %618 = vmatprep.subr.mxu0 %v377
    %619 = vmatpush1.msra.mxu0 %v376
    %620 = vmatprep.subr.mxu0 %v381
    %621 = vmatpush1.msra.mxu0 %v380
    %622 = vmatprep.subr.mxu0 %v385
    %623 = vmatpush1.msra.mxu0 %v384
    %624 = vmatprep.subr.mxu0 %v389
    %625 = vmatpush1.msra.mxu0 %v388
    %626 = vmatprep.subr.mxu0 %v393
    %627 = vmatpush1.msra.mxu0 %v392
    %628 = vmatprep.subr.mxu0 %v397
    %629 = vmatpush1.msra.mxu0 %v396
    %630 = vmatprep.subr.mxu0 %v401
    %631 = vmatpush1.msra.mxu0 %v400
    %632 = vmatprep.subr.mxu0 %v405
    %633 = vmatpush1.msra.mxu0 %v404
    %634 = vmatprep.subr.mxu0 %v409
    %635 = vmatpush1.msra.mxu0 %v408
    %636 = vmatprep.subr.mxu0 %v413
    %637 = vmatpush1.msra.mxu0 %v412
    %638 = vmatprep.subr.mxu0 %v417
    %639 = vmatpush1.msra.mxu0 %v416
    %640 = vmatprep.subr.mxu0 %v421
    %641 = vmatpush1.msra.mxu0 %v420
    %642 = vmatprep.subr.mxu0 %v425
    %643 = vmatpush1.msra.mxu0 %v424
    %644 = vmatprep.subr.mxu0 %v429
    %645 = vmatpush1.msra.mxu0 %v428
    %646 = vmatprep.mubr.f32.mxu0 %v301
    %647 = vmatmul.mubr.f32.gmra.mrb[0].mxu0 %v300
    %v648 = vpop.f32.mrb[0].mxu0
    %v649 = vadd.f32 %v565, %v648
    %v650 = vpop.f32.mrb[0].mxu0
    %v651 = vadd.f32 %v569, %v650
    %652 = vdwg.mxu0
    %653 = vmatprep.subr.mxu0 %v433
    %654 = vmatpush1.msra.mxu0 %v432
    %655 = vmatprep.subr.mxu0 %v437
    %656 = vmatpush1.msra.mxu0 %v436
    %657 = vmatprep.subr.mxu0 %v441
    %658 = vmatpush1.msra.mxu0 %v440
    %659 = vmatprep.subr.mxu0 %v445
    %660 = vmatpush1.msra.mxu0 %v444
    %661 = vmatprep.subr.mxu0 %v449
    %662 = vmatpush1.msra.mxu0 %v448
    %663 = vmatprep.subr.mxu0 %v453
    %664 = vmatpush1.msra.mxu0 %v452
    %665 = vmatprep.subr.mxu0 %v457
    %666 = vmatpush1.msra.mxu0 %v456
    %667 = vmatprep.subr.mxu0 %v461
    %668 = vmatpush1.msra.mxu0 %v460
    %669 = vmatprep.subr.mxu0 %v465
    %670 = vmatpush1.msra.mxu0 %v464
    %671 = vmatprep.subr.mxu0 %v469
    %672 = vmatpush1.msra.mxu0 %v468
    %673 = vmatprep.subr.mxu0 %v473
    %674 = vmatpush1.msra.mxu0 %v472
    %675 = vmatprep.subr.mxu0 %v477
    %676 = vmatpush1.msra.mxu0 %v476
    %677 = vmatprep.subr.mxu0 %v481
    %678 = vmatpush1.msra.mxu0 %v480
    %679 = vmatprep.subr.mxu0 %v485
    %680 = vmatpush1.msra.mxu0 %v484
    %681 = vmatprep.subr.mxu0 %v489
    %682 = vmatpush1.msra.mxu0 %v488
    %683 = vmatprep.subr.mxu0 %v493
    %684 = vmatpush1.msra.mxu0 %v492
    %685 = vmatprep.subr.mxu0 %v497
    %686 = vmatpush1.msra.mxu0 %v496
    %687 = vmatprep.subr.mxu0 %v501
    %688 = vmatpush1.msra.mxu0 %v500
    %689 = vmatprep.subr.mxu0 %v505
    %690 = vmatpush1.msra.mxu0 %v504
    %691 = vmatprep.subr.mxu0 %v509
    %692 = vmatpush1.msra.mxu0 %v508
    %693 = vmatprep.subr.mxu0 %v513
    %694 = vmatpush1.msra.mxu0 %v512
    %695 = vmatprep.subr.mxu0 %v517
    %696 = vmatpush1.msra.mxu0 %v516
    %697 = vmatprep.subr.mxu0 %v521
    %698 = vmatpush1.msra.mxu0 %v520
    %699 = vmatprep.subr.mxu0 %v525
    %700 = vmatpush1.msra.mxu0 %v524
    %701 = vmatprep.subr.mxu0 %v529
    %702 = vmatpush1.msra.mxu0 %v528
    %703 = vmatprep.subr.mxu0 %v533
    %704 = vmatpush1.msra.mxu0 %v532
    %705 = vmatprep.subr.mxu0 %v537
    %706 = vmatpush1.msra.mxu0 %v536
    %707 = vmatprep.subr.mxu0 %v541
    %708 = vmatpush1.msra.mxu0 %v540
    %709 = vmatprep.subr.mxu0 %v545
    %710 = vmatpush1.msra.mxu0 %v544
    %711 = vmatprep.subr.mxu0 %v549
    %712 = vmatpush1.msra.mxu0 %v548
    %713 = vmatprep.subr.mxu0 %v553
    %714 = vmatpush1.msra.mxu0 %v552
    %715 = vmatprep.subr.mxu0 %v557
    %716 = vmatpush1.msra.mxu0 %v556
    %717 = vmatprep.mubr.f32.mxu0 %v303
    %718 = vmatmul.mubr.f32.gmra.mrb[0].mxu0 %v302
    %v719 = vpop.f32.mrb[0].mxu0
    %v720 = vadd.f32 %v649, %v719
    %v721 = vpop.f32.mrb[0].mxu0
    %v722 = vadd.f32 %v651, %v721
    %723 = vdwg.mxu0
    %724 = vmatprep.subr.mxu0 %v307
    %725 = vmatpush1.msra.mxu0 %v306
    %726 = vmatprep.subr.mxu0 %v311
    %727 = vmatpush1.msra.mxu0 %v310
    %728 = vmatprep.subr.mxu0 %v315
    %729 = vmatpush1.msra.mxu0 %v314
    %730 = vmatprep.subr.mxu0 %v319
    %731 = vmatpush1.msra.mxu0 %v318
    %732 = vmatprep.subr.mxu0 %v323
    %733 = vmatpush1.msra.mxu0 %v322
    %734 = vmatprep.subr.mxu0 %v327
    %735 = vmatpush1.msra.mxu0 %v326
    %736 = vmatprep.subr.mxu0 %v331
    %737 = vmatpush1.msra.mxu0 %v330
    %738 = vmatprep.subr.mxu0 %v335
    %739 = vmatpush1.msra.mxu0 %v334
    %740 = vmatprep.subr.mxu0 %v339
    %741 = vmatpush1.msra.mxu0 %v338
    %742 = vmatprep.subr.mxu0 %v343
    %743 = vmatpush1.msra.mxu0 %v342
    %744 = vmatprep.subr.mxu0 %v347
    %745 = vmatpush1.msra.mxu0 %v346
    %746 = vmatprep.subr.mxu0 %v351
    %747 = vmatpush1.msra.mxu0 %v350
    %748 = vmatprep.subr.mxu0 %v355
    %749 = vmatpush1.msra.mxu0 %v354
    %750 = vmatprep.subr.mxu0 %v359
    %751 = vmatpush1.msra.mxu0 %v358
    %752 = vmatprep.subr.mxu0 %v363
    %753 = vmatpush1.msra.mxu0 %v362
    %754 = vmatprep.subr.mxu0 %v367
    %755 = vmatpush1.msra.mxu0 %v366
    %756 = vmatprep.subr.mxu0 %v371
    %757 = vmatpush1.msra.mxu0 %v370
    %758 = vmatprep.subr.mxu0 %v375
    %759 = vmatpush1.msra.mxu0 %v374
    %760 = vmatprep.subr.mxu0 %v379
    %761 = vmatpush1.msra.mxu0 %v378
    %762 = vmatprep.subr.mxu0 %v383
    %763 = vmatpush1.msra.mxu0 %v382
    %764 = vmatprep.subr.mxu0 %v387
    %765 = vmatpush1.msra.mxu0 %v386
    %766 = vmatprep.subr.mxu0 %v391
    %767 = vmatpush1.msra.mxu0 %v390
    %768 = vmatprep.subr.mxu0 %v395
    %769 = vmatpush1.msra.mxu0 %v394
    %770 = vmatprep.subr.mxu0 %v399
    %771 = vmatpush1.msra.mxu0 %v398
    %772 = vmatprep.subr.mxu0 %v403
    %773 = vmatpush1.msra.mxu0 %v402
    %774 = vmatprep.subr.mxu0 %v407
    %775 = vmatpush1.msra.mxu0 %v406
    %776 = vmatprep.subr.mxu0 %v411
    %777 = vmatpush1.msra.mxu0 %v410
    %778 = vmatprep.subr.mxu0 %v415
    %779 = vmatpush1.msra.mxu0 %v414
    %780 = vmatprep.subr.mxu0 %v419
    %781 = vmatpush1.msra.mxu0 %v418
    %782 = vmatprep.subr.mxu0 %v423
    %783 = vmatpush1.msra.mxu0 %v422
    %784 = vmatprep.subr.mxu0 %v427
    %785 = vmatpush1.msra.mxu0 %v426
    %786 = vmatprep.subr.mxu0 %v431
    %787 = vmatpush1.msra.mxu0 %v430
    %788 = vmatprep.mubr.f32.mxu0 %v301
    %789 = vmatmul.mubr.f32.gmra.mrb[0].mxu0 %v300
    %v790 = vpop.f32.mrb[0].mxu0
    %v791 = vadd.f32 %v573, %v790
    %v792 = vpop.f32.mrb[0].mxu0
    %v793 = vadd.f32 %v577, %v792
    %794 = vdwg.mxu0
    %795 = vmatprep.subr.mxu0 %v435
    %796 = vmatpush1.msra.mxu0 %v434
    %797 = vmatprep.subr.mxu0 %v439
    %798 = vmatpush1.msra.mxu0 %v438
    %799 = vmatprep.subr.mxu0 %v443
    %800 = vmatpush1.msra.mxu0 %v442
    %801 = vmatprep.subr.mxu0 %v447
    %802 = vmatpush1.msra.mxu0 %v446
    %803 = vmatprep.subr.mxu0 %v451
    %804 = vmatpush1.msra.mxu0 %v450
    %805 = vmatprep.subr.mxu0 %v455
    %806 = vmatpush1.msra.mxu0 %v454
    %807 = vmatprep.subr.mxu0 %v459
    %808 = vmatpush1.msra.mxu0 %v458
    %809 = vmatprep.subr.mxu0 %v463
    %810 = vmatpush1.msra.mxu0 %v462
    %811 = vmatprep.subr.mxu0 %v467
    %812 = vmatpush1.msra.mxu0 %v466
    %813 = vmatprep.subr.mxu0 %v471
    %814 = vmatpush1.msra.mxu0 %v470
    %815 = vmatprep.subr.mxu0 %v475
    %816 = vmatpush1.msra.mxu0 %v474
    %817 = vmatprep.subr.mxu0 %v479
    %818 = vmatpush1.msra.mxu0 %v478
    %819 = vmatprep.subr.mxu0 %v483
    %820 = vmatpush1.msra.mxu0 %v482
    %821 = vmatprep.subr.mxu0 %v487
    %822 = vmatpush1.msra.mxu0 %v486
    %823 = vmatprep.subr.mxu0 %v491
    %824 = vmatpush1.msra.mxu0 %v490
    %825 = vmatprep.subr.mxu0 %v495
    %826 = vmatpush1.msra.mxu0 %v494
    %827 = vmatprep.subr.mxu0 %v499
    %828 = vmatpush1.msra.mxu0 %v498
    %829 = vmatprep.subr.mxu0 %v503
    %830 = vmatpush1.msra.mxu0 %v502
    %831 = vmatprep.subr.mxu0 %v507
    %832 = vmatpush1.msra.mxu0 %v506
    %833 = vmatprep.subr.mxu0 %v511
    %834 = vmatpush1.msra.mxu0 %v510
    %835 = vmatprep.subr.mxu0 %v515
    %836 = vmatpush1.msra.mxu0 %v514
    %837 = vmatprep.subr.mxu0 %v519
    %838 = vmatpush1.msra.mxu0 %v518
    %839 = vmatprep.subr.mxu0 %v523
    %840 = vmatpush1.msra.mxu0 %v522
    %841 = vmatprep.subr.mxu0 %v527
    %842 = vmatpush1.msra.mxu0 %v526
    %843 = vmatprep.subr.mxu0 %v531
    %844 = vmatpush1.msra.mxu0 %v530
    %845 = vmatprep.subr.mxu0 %v535
    %846 = vmatpush1.msra.mxu0 %v534
    %847 = vmatprep.subr.mxu0 %v539
    %848 = vmatpush1.msra.mxu0 %v538
    %849 = vmatprep.subr.mxu0 %v543
    %850 = vmatpush1.msra.mxu0 %v542
    %851 = vmatprep.subr.mxu0 %v547
    %852 = vmatpush1.msra.mxu0 %v546
    %853 = vmatprep.subr.mxu0 %v551
    %854 = vmatpush1.msra.mxu0 %v550
    %855 = vmatprep.subr.mxu0 %v555
    %856 = vmatpush1.msra.mxu0 %v554
    %857 = vmatprep.subr.mxu0 %v559
    %858 = vmatpush1.msra.mxu0 %v558
    %859 = vmatprep.mubr.f32.mxu0 %v303
    %860 = vmatmul.mubr.f32.gmra.mrb[0].mxu0 %v302
    %v861 = vpop.f32.mrb[0].mxu0
    %v862 = vadd.f32 %v791, %v861
    %v863 = vpop.f32.mrb[0].mxu0
    %v864 = vadd.f32 %v793, %v863
    %865 = vdwg.mxu0
    %v866 = vxor.u32 %v720, 2147483648
    %v867 = vxor.u32 %v722, 2147483648
    %v868 = vxor.u32 %v862, 2147483648
    %v869 = vxor.u32 %v864, 2147483648
    %v870 = vmul.f32 %v866, 1.442695
    %v871 = vpow.pop %v870
    %v872 = vmul.f32 %v867, 1.442695
    %v873 = vpow.pop %v872
    %v874 = vmul.f32 %v868, 1.442695
    %v875 = vpow.pop %v874
    %v876 = vmul.f32 %v869, 1.442695
    %v877 = vpow.pop %v876
    %v878 = vadd.f32 %v871, 1.0
    %v879 = vadd.f32 %v873, 1.0
    %v880 = vadd.f32 %v875, 1.0
    %v881 = vadd.f32 %v877, 1.0
    %v882 = vrcp.pop %v878
    %v883 = vmul.f32 1.0, %v882
    %v884 = vrcp.pop %v879
    %v885 = vmul.f32 1.0, %v884
    %v886 = vrcp.pop %v880
    %v887 = vmul.f32 1.0, %v886
    %v888 = vrcp.pop %v881
    %v889 = vmul.f32 1.0, %v888
    %v890 = vmul.f32 %v720, %v883
    %v891 = vmul.f32 %v722, %v885
    %v892 = vmul.f32 %v862, %v887
    %v893 = vmul.f32 %v864, %v889
    %v894 = vld [vmem:[%s5] sm:$0xff]
    %v895 = vld [vmem:[%s5 + $0x8] sm:$0xff]
    %v896 = vld [vmem:[%s5 + $0x10] sm:$0xff]
    %v897 = vld [vmem:[%s5 + $0x18] sm:$0xff]
    %v898 = vld [vmem:[%s5 + $0x20] sm:$0xff]
    %v899 = vld [vmem:[%s5 + $0x28] sm:$0xff]
    %v900 = vld [vmem:[%s5 + $0x30] sm:$0xff]
    %v901 = vld [vmem:[%s5 + $0x38] sm:$0xff]
    %v902 = vld [vmem:[%s5 + $0x40] sm:$0xff]
    %v903 = vld [vmem:[%s5 + $0x48] sm:$0xff]
    %v904 = vld [vmem:[%s5 + $0x50] sm:$0xff]
    %v905 = vld [vmem:[%s5 + $0x58] sm:$0xff]
    %v906 = vld [vmem:[%s5 + $0x60] sm:$0xff]
    %v907 = vld [vmem:[%s5 + $0x68] sm:$0xff]
    %v908 = vld [vmem:[%s5 + $0x70] sm:$0xff]
    %v909 = vld [vmem:[%s5 + $0x78] sm:$0xff]
    %v910 = vld [vmem:[%s5 + $0x80] sm:$0xff]
    %v911 = vld [vmem:[%s5 + $0x88] sm:$0xff]
    %v912 = vld [vmem:[%s5 + $0x90] sm:$0xff]
    %v913 = vld [vmem:[%s5 + $0x98] sm:$0xff]
    %v914 = vld [vmem:[%s5 + $0xa0] sm:$0xff]
    %v915 = vld [vmem:[%s5 + $0xa8] sm:$0xff]
    %v916 = vld [vmem:[%s5 + $0xb0] sm:$0xff]
    %v917 = vld [vmem:[%s5 + $0xb8] sm:$0xff]
    %v918 = vld [vmem:[%s5 + $0xc0] sm:$0xff]
    %v919 = vld [vmem:[%s5 + $0xc8] sm:$0xff]
    %v920 = vld [vmem:[%s5 + $0xd0] sm:$0xff]
    %v921 = vld [vmem:[%s5 + $0xd8] sm:$0xff]
    %v922 = vld [vmem:[%s5 + $0xe0] sm:$0xff]
    %v923 = vld [vmem:[%s5 + $0xe8] sm:$0xff]
    %v924 = vld [vmem:[%s5 + $0xf0] sm:$0xff]
    %v925 = vld [vmem:[%s5 + $0xf8] sm:$0xff]
    %v926 = vld [vmem:[%s5 + $0x100] sm:$0xff]
    %v927 = vld [vmem:[%s5 + $0x108] sm:$0xff]
    %v928 = vld [vmem:[%s5 + $0x110] sm:$0xff]
    %v929 = vld [vmem:[%s5 + $0x118] sm:$0xff]
    %v930 = vld [vmem:[%s5 + $0x120] sm:$0xff]
    %v931 = vld [vmem:[%s5 + $0x128] sm:$0xff]
    %v932 = vld [vmem:[%s5 + $0x130] sm:$0xff]
    %v933 = vld [vmem:[%s5 + $0x138] sm:$0xff]
    %v934 = vld [vmem:[%s5 + $0x140] sm:$0xff]
    %v935 = vld [vmem:[%s5 + $0x148] sm:$0xff]
    %v936 = vld [vmem:[%s5 + $0x150] sm:$0xff]
    %v937 = vld [vmem:[%s5 + $0x158] sm:$0xff]
    %v938 = vld [vmem:[%s5 + $0x160] sm:$0xff]
    %v939 = vld [vmem:[%s5 + $0x168] sm:$0xff]
    %v940 = vld [vmem:[%s5 + $0x170] sm:$0xff]
    %v941 = vld [vmem:[%s5 + $0x178] sm:$0xff]
    %v942 = vld [vmem:[%s5 + $0x180] sm:$0xff]
    %v943 = vld [vmem:[%s5 + $0x188] sm:$0xff]
    %v944 = vld [vmem:[%s5 + $0x190] sm:$0xff]
    %v945 = vld [vmem:[%s5 + $0x198] sm:$0xff]
    %v946 = vld [vmem:[%s5 + $0x1a0] sm:$0xff]
    %v947 = vld [vmem:[%s5 + $0x1a8] sm:$0xff]
    %v948 = vld [vmem:[%s5 + $0x1b0] sm:$0xff]
    %v949 = vld [vmem:[%s5 + $0x1b8] sm:$0xff]
    %v950 = vld [vmem:[%s5 + $0x1c0] sm:$0xff]
    %v951 = vld [vmem:[%s5 + $0x1c8] sm:$0xff]
    %v952 = vld [vmem:[%s5 + $0x1d0] sm:$0xff]
    %v953 = vld [vmem:[%s5 + $0x1d8] sm:$0xff]
    %v954 = vld [vmem:[%s5 + $0x1e0] sm:$0xff]
    %v955 = vld [vmem:[%s5 + $0x1e8] sm:$0xff]
    %v956 = vld [vmem:[%s5 + $0x1f0] sm:$0xff]
    %v957 = vld [vmem:[%s5 + $0x1f8] sm:$0xff]
    %v958 = vld [vmem:[%s6] sm:$0x1]
    %v960 = vlaneseq
    %v961 = vshrl.u32 %v960, 7
    %v962 = vsub.s32 0, %v961
    %v963 = vrot.slane %v958, %v962
    %965 = vmatprep.subr.mxu0 0.0
    %966 = vmatpush1.msra.mxu0 %v894
    %967 = vmatprep.subr.mxu0 0.0
    %968 = vmatpush1.msra.mxu0 %v895
    %969 = vmatprep.subr.mxu0 0.0
    %970 = vmatpush1.msra.mxu0 %v896
    %971 = vmatprep.subr.mxu0 0.0
    %972 = vmatpush1.msra.mxu0 %v897
    %973 = vmatprep.subr.mxu0 0.0
    %974 = vmatpush1.msra.mxu0 %v898
    %975 = vmatprep.subr.mxu0 0.0
    %976 = vmatpush1.msra.mxu0 %v899
    %977 = vmatprep.subr.mxu0 0.0
    %978 = vmatpush1.msra.mxu0 %v900
    %979 = vmatprep.subr.mxu0 0.0
    %980 = vmatpush1.msra.mxu0 %v901
    %981 = vmatprep.subr.mxu0 0.0
    %982 = vmatpush1.msra.mxu0 %v902
    %983 = vmatprep.subr.mxu0 0.0
    %984 = vmatpush1.msra.mxu0 %v903
    %985 = vmatprep.subr.mxu0 0.0
    %986 = vmatpush1.msra.mxu0 %v904
    %987 = vmatprep.subr.mxu0 0.0
    %988 = vmatpush1.msra.mxu0 %v905
    %989 = vmatprep.subr.mxu0 0.0
    %990 = vmatpush1.msra.mxu0 %v906
    %991 = vmatprep.subr.mxu0 0.0
    %992 = vmatpush1.msra.mxu0 %v907
    %993 = vmatprep.subr.mxu0 0.0
    %994 = vmatpush1.msra.mxu0 %v908
    %995 = vmatprep.subr.mxu0 0.0
    %996 = vmatpush1.msra.mxu0 %v909
    %997 = vmatprep.subr.mxu0 0.0
    %998 = vmatpush1.msra.mxu0 %v910
    %999 = vmatprep.subr.mxu0 0.0
    %1000 = vmatpush1.msra.mxu0 %v911
    %1001 = vmatprep.subr.mxu0 0.0
    %1002 = vmatpush1.msra.mxu0 %v912
    %1003 = vmatprep.subr.mxu0 0.0
    %1004 = vmatpush1.msra.mxu0 %v913
    %1005 = vmatprep.subr.mxu0 0.0
    %1006 = vmatpush1.msra.mxu0 %v914
    %1007 = vmatprep.subr.mxu0 0.0
    %1008 = vmatpush1.msra.mxu0 %v915
    %1009 = vmatprep.subr.mxu0 0.0
    %1010 = vmatpush1.msra.mxu0 %v916
    %1011 = vmatprep.subr.mxu0 0.0
    %1012 = vmatpush1.msra.mxu0 %v917
    %1013 = vmatprep.subr.mxu0 0.0
    %1014 = vmatpush1.msra.mxu0 %v918
    %1015 = vmatprep.subr.mxu0 0.0
    %1016 = vmatpush1.msra.mxu0 %v919
    %1017 = vmatprep.subr.mxu0 0.0
    %1018 = vmatpush1.msra.mxu0 %v920
    %1019 = vmatprep.subr.mxu0 0.0
    %1020 = vmatpush1.msra.mxu0 %v921
    %1021 = vmatprep.subr.mxu0 0.0
    %1022 = vmatpush1.msra.mxu0 %v922
    %1023 = vmatprep.subr.mxu0 0.0
    %1024 = vmatpush1.msra.mxu0 %v923
    %1025 = vmatprep.subr.mxu0 0.0
    %1026 = vmatpush1.msra.mxu0 %v924
    %1027 = vmatprep.subr.mxu0 0.0
    %1028 = vmatpush1.msra.mxu0 %v925
    %1029 = vmatprep.mubr.f32.mxu0 %v891
    %1030 = vmatmul.mubr.f32.gmra.mrb[0].mxu0 %v890
    %v1031 = vpop.f32.mrb[0].mxu0
    %v1032 = vadd.f32 %v963, %v1031
    %v1033 = vpop.f32.mrb[0].mxu0
    %1034 = vdwg.mxu0
    %1035 = vmatprep.subr.mxu0 0.0
    %1036 = vmatpush1.msra.mxu0 %v926
    %1037 = vmatprep.subr.mxu0 0.0
    %1038 = vmatpush1.msra.mxu0 %v927
    %1039 = vmatprep.subr.mxu0 0.0
    %1040 = vmatpush1.msra.mxu0 %v928
    %1041 = vmatprep.subr.mxu0 0.0
    %1042 = vmatpush1.msra.mxu0 %v929
    %1043 = vmatprep.subr.mxu0 0.0
    %1044 = vmatpush1.msra.mxu0 %v930
    %1045 = vmatprep.subr.mxu0 0.0
    %1046 = vmatpush1.msra.mxu0 %v931
    %1047 = vmatprep.subr.mxu0 0.0
    %1048 = vmatpush1.msra.mxu0 %v932
    %1049 = vmatprep.subr.mxu0 0.0
    %1050 = vmatpush1.msra.mxu0 %v933
    %1051 = vmatprep.subr.mxu0 0.0
    %1052 = vmatpush1.msra.mxu0 %v934
    %1053 = vmatprep.subr.mxu0 0.0
    %1054 = vmatpush1.msra.mxu0 %v935
    %1055 = vmatprep.subr.mxu0 0.0
    %1056 = vmatpush1.msra.mxu0 %v936
    %1057 = vmatprep.subr.mxu0 0.0
    %1058 = vmatpush1.msra.mxu0 %v937
    %1059 = vmatprep.subr.mxu0 0.0
    %1060 = vmatpush1.msra.mxu0 %v938
    %1061 = vmatprep.subr.mxu0 0.0
    %1062 = vmatpush1.msra.mxu0 %v939
    %1063 = vmatprep.subr.mxu0 0.0
    %1064 = vmatpush1.msra.mxu0 %v940
    %1065 = vmatprep.subr.mxu0 0.0
    %1066 = vmatpush1.msra.mxu0 %v941
    %1067 = vmatprep.subr.mxu0 0.0
    %1068 = vmatpush1.msra.mxu0 %v942
    %1069 = vmatprep.subr.mxu0 0.0
    %1070 = vmatpush1.msra.mxu0 %v943
    %1071 = vmatprep.subr.mxu0 0.0
    %1072 = vmatpush1.msra.mxu0 %v944
    %1073 = vmatprep.subr.mxu0 0.0
    %1074 = vmatpush1.msra.mxu0 %v945
    %1075 = vmatprep.subr.mxu0 0.0
    %1076 = vmatpush1.msra.mxu0 %v946
    %1077 = vmatprep.subr.mxu0 0.0
    %1078 = vmatpush1.msra.mxu0 %v947
    %1079 = vmatprep.subr.mxu0 0.0
    %1080 = vmatpush1.msra.mxu0 %v948
    %1081 = vmatprep.subr.mxu0 0.0
    %1082 = vmatpush1.msra.mxu0 %v949
    %1083 = vmatprep.subr.mxu0 0.0
    %1084 = vmatpush1.msra.mxu0 %v950
    %1085 = vmatprep.subr.mxu0 0.0
    %1086 = vmatpush1.msra.mxu0 %v951
    %1087 = vmatprep.subr.mxu0 0.0
    %1088 = vmatpush1.msra.mxu0 %v952
    %1089 = vmatprep.subr.mxu0 0.0
    %1090 = vmatpush1.msra.mxu0 %v953
    %1091 = vmatprep.subr.mxu0 0.0
    %1092 = vmatpush1.msra.mxu0 %v954
    %1093 = vmatprep.subr.mxu0 0.0
    %1094 = vmatpush1.msra.mxu0 %v955
    %1095 = vmatprep.subr.mxu0 0.0
    %1096 = vmatpush1.msra.mxu0 %v956
    %1097 = vmatprep.subr.mxu0 0.0
    %1098 = vmatpush1.msra.mxu0 %v957
    %1099 = vmatprep.mubr.f32.mxu0 %v893
    %1100 = vmatmul.mubr.f32.gmra.mrb[0].mxu0 %v892
    %v1101 = vpop.f32.mrb[0].mxu0
    %v1102 = vadd.f32 %v1032, %v1101
    %v1103 = vpop.f32.mrb[0].mxu0
    %1104 = vdwg.mxu0
    %v1105 = vld [vmem:[%s7] sm:$0xff]
    %v1106 = vld [vmem:[%s8] sm:$0x1]
    %v1108 = vlaneseq
    %v1109 = vshrl.u32 %v1108, 7
    %v1110 = vsub.s32 0, %v1109
    %v1111 = vrot.slane %v1106, %v1110
    %vm1113 = vcmask 64512
    %v1115 = vsel %vm1113, %v1102, 0
    %1117 = vmatprep.subr.mxu0 0.0
    %1118 = vmatpush1.msra.mxu0 %v1105
    %1119 = vmatprep.subr.mxu0 0.0
    %1120 = vmatpush1.msra.mxu0 0.0
    %1121 = vmatprep.subr.mxu0 0.0
    %1122 = vmatpush1.msra.mxu0 0.0
    %1123 = vmatprep.subr.mxu0 0.0
    %1124 = vmatpush1.msra.mxu0 0.0
    %1125 = vmatprep.subr.mxu0 0.0
    %1126 = vmatpush1.msra.mxu0 0.0
    %1127 = vmatprep.subr.mxu0 0.0
    %1128 = vmatpush1.msra.mxu0 0.0
    %1129 = vmatprep.subr.mxu0 0.0
    %1130 = vmatpush1.msra.mxu0 0.0
    %1131 = vmatprep.subr.mxu0 0.0
    %1132 = vmatpush1.msra.mxu0 0.0
    %1133 = vmatprep.subr.mxu0 0.0
    %1134 = vmatpush1.msra.mxu0 0.0
    %1135 = vmatprep.subr.mxu0 0.0
    %1136 = vmatpush1.msra.mxu0 0.0
    %1137 = vmatprep.subr.mxu0 0.0
    %1138 = vmatpush1.msra.mxu0 0.0
    %1139 = vmatprep.subr.mxu0 0.0
    %1140 = vmatpush1.msra.mxu0 0.0
    %1141 = vmatprep.subr.mxu0 0.0
    %1142 = vmatpush1.msra.mxu0 0.0
    %1143 = vmatprep.subr.mxu0 0.0
    %1144 = vmatpush1.msra.mxu0 0.0
    %1145 = vmatprep.subr.mxu0 0.0
    %1146 = vmatpush1.msra.mxu0 0.0
    %1147 = vmatprep.subr.mxu0 0.0
    %1148 = vmatpush1.msra.mxu0 0.0
    %1149 = vmatprep.subr.mxu0 0.0
    %1150 = vmatpush1.msra.mxu0 0.0
    %1151 = vmatprep.subr.mxu0 0.0
    %1152 = vmatpush1.msra.mxu0 0.0
    %1153 = vmatprep.subr.mxu0 0.0
    %1154 = vmatpush1.msra.mxu0 0.0
    %1155 = vmatprep.subr.mxu0 0.0
    %1156 = vmatpush1.msra.mxu0 0.0
    %1157 = vmatprep.subr.mxu0 0.0
    %1158 = vmatpush1.msra.mxu0 0.0
    %1159 = vmatprep.subr.mxu0 0.0
    %1160 = vmatpush1.msra.mxu0 0.0
    %1161 = vmatprep.subr.mxu0 0.0
    %1162 = vmatpush1.msra.mxu0 0.0
    %1163 = vmatprep.subr.mxu0 0.0
    %1164 = vmatpush1.msra.mxu0 0.0
    %1165 = vmatprep.subr.mxu0 0.0
    %1166 = vmatpush1.msra.mxu0 0.0
    %1167 = vmatprep.subr.mxu0 0.0
    %1168 = vmatpush1.msra.mxu0 0.0
    %1169 = vmatprep.subr.mxu0 0.0
    %1170 = vmatpush1.msra.mxu0 0.0
    %1171 = vmatprep.subr.mxu0 0.0
    %1172 = vmatpush1.msra.mxu0 0.0
    %1173 = vmatprep.subr.mxu0 0.0
    %1174 = vmatpush1.msra.mxu0 0.0
    %1175 = vmatprep.subr.mxu0 0.0
    %1176 = vmatpush1.msra.mxu0 0.0
    %1177 = vmatprep.subr.mxu0 0.0
    %1178 = vmatpush1.msra.mxu0 0.0
    %1179 = vmatprep.subr.mxu0 0.0
    %1180 = vmatpush1.msra.mxu0 0.0
    %1181 = vmatprep.mubr.f32.mxu0 0.0
    %1182 = vmatmul.mubr.f32.gmra.mrb[0].mxu0 %v1115
    %v1183 = vpop.f32.mrb[0].mxu0
    %v1184 = vadd.f32 %v1111, %v1183
    %v1185 = vpop.f32.mrb[0].mxu0
    %1186 = vdwg.mxu0
    %vm1187 = vcmask 123904
    %1188 = vst.msk [vmem:[#allocation5] sm:$0x3] %vm1187, %v1184
    // Predicated region
    $region42: #{tpu_custom_call.1} parent=1 // pred_check
      _
    $region43: #{tpu_custom_call.1} parent=1 // pred_check_branch
      %1190 = sbr.rel (0) target = $region45
    $region44: #{tpu_custom_call.1} parent=1 // pred_region
      %s1192 = ssub.s32 32, 32
      %1193 = vsyncadd [#allocation4], %s1192
      %s1195 = sshll.u32 [#allocation5], 4
      %s1196 = int_to_ptr.vmem [resolvable:$true] %s1195
      %1198 = dma.vmem_to_hbm [thread:$0]  %s1196, 32, %s9, [#allocation4]
    $region45: #{tpu_custom_call.1} parent=1 // pred_fallthru
      _
    // Predicated region
    $region46: #{tpu_custom_call.1} parent=1 // pred_check
      _
    $region47: #{tpu_custom_call.1} parent=1 // pred_check_branch
      %1200 = sbr.rel (0) target = $region49
    $region48: #{tpu_custom_call.1} parent=1 // pred_region
      %1201 = dma.done [#allocation4], 32
    $region49: #{tpu_custom_call.1} parent=1 // pred_fallthru
      _
    %1202 = vsyncpa [#allocation3], 1
    %1203 = vsyncpa [#allocation4], 1

</llo_original>
